<compile_context>
chip_gen: v7x
topology: tpu7x:2x2x1
jax: 0.10.0
libtpu: 0.0.40
codegen_flags: <defaults>
</compile_context>

<pallas_src>
import functools

import numpy as np

import jax
import jax.numpy as jnp
from jax.experimental import pallas as pl
from jax.experimental.pallas import tpu as pltpu


# ----------------------------------------------------------------------------
# Fused decode-loop kernel: grid axis = decode step (sequential, carried state)
# ----------------------------------------------------------------------------
def _object_decoder_kernel(
    start_ref,    # scalar prefetch: (1,) int32  start token id (<s>)
    emb_ref,      # (V, H)   embedding table
    enc_ref,      # (B, H)   encoder input (constant across steps)
    h0_ref,       # (B, H)   initial GRU hidden
    w_i_ref,      # (2H, 3H) fused input weights  [emb rows | enc rows] x [r|z|n]
    w_h_ref,      # (H, 3H)  fused hidden weights [r|z|n]
    b_ref,        # (2, 3H)  row0 = [b_r | b_z | b_in], row1 = [0 | 0 | b_hn]
    w_out_ref,    # (H, V)   output projection
    b_out_ref,    # (1, V)
    code_ref,     # (B, V)   mask code: 2=valid&graph, 1=valid only, 0=invalid
    logits_ref,   # out: (1, B, V)  this step's pre-softmax logits
    words_ref,    # out: (1, B, 1)  this step's chosen object ids
    h_scr,        # scratch VMEM (B, H)   carried GRU hidden
    onehot_scr,   # scratch VMEM (B, V)   carried token as one-hot
    genc_scr,     # scratch VMEM (B, 3H)  enc_input @ W_i[enc rows] (constant)
):
    step = pl.program_id(0)
    B, V = code_ref.shape
    H = h0_ref.shape[1]

    @pl.when(step == 0)
    def _init():
        h_scr[...] = h0_ref[...]
        sid = start_ref[0]
        col0 = jax.lax.broadcasted_iota(jnp.int32, (B, V), 1)
        onehot_scr[...] = (col0 == sid).astype(jnp.float32)
        # Encoder contribution to the input gates is step-invariant: compute once.
        w_i_full = w_i_ref[...]
        genc_scr[...] = jnp.dot(enc_ref[...], w_i_full[H:, :],
                                preferred_element_type=jnp.float32)

    # --- embedding lookup (one-hot matmul on the MXU) ---
    emb = jnp.dot(onehot_scr[...], emb_ref[...],
                  preferred_element_type=jnp.float32)                  # (B, H)
    h = h_scr[...]

    # --- fused GRU cell (single step) ---
    w_i = w_i_ref[...]
    g_i = jnp.dot(emb, w_i[:H, :],
                  preferred_element_type=jnp.float32) + genc_scr[...]  # (B, 3H)
    g_h = jnp.dot(h, w_h_ref[...],
                  preferred_element_type=jnp.float32)                  # (B, 3H)

    b = b_ref[...]
    a = g_i + b[0:1, :]          # input-side gates + [b_r | b_z | b_in]
    c = g_h + b[1:2, :]          # hidden-side gates + [0 | 0 | b_hn]
    r = jax.nn.sigmoid(a[:, :H] + c[:, :H])
    z = jax.nn.sigmoid(a[:, H:2 * H] + c[:, H:2 * H])
    n = jnp.tanh(a[:, 2 * H:] + r * c[:, 2 * H:])
    h_new = (1.0 - z) * n + z * h
    h_scr[...] = h_new

    # --- output projection (ret_decoder_output, pre-softmax logits) ---
    logits = jnp.dot(h_new, w_out_ref[...],
                     preferred_element_type=jnp.float32) + b_out_ref[...]
    logits_ref[...] = logits.reshape(1, B, V)

    # --- graph/valid-masked argmax directly on logits (softmax is monotone) ---
    code = code_ref[...]
    score = jnp.where(code >= 2.0, logits,
                      jnp.where(code >= 1.0, -1e30, -2e30))
    max_v = jnp.max(score, axis=-1, keepdims=True)
    col = jax.lax.broadcasted_iota(jnp.int32, (B, V), 1)
    idx = jnp.min(jnp.where(score == max_v, col, V),
                  axis=-1, keepdims=True).astype(jnp.int32)            # (B, 1)
    words_ref[...] = idx.reshape(1, B, 1)

    # Carried token for the next step (one-hot feeds the embedding matmul).
    onehot_scr[...] = (col == idx).astype(jnp.float32)


def _resident_spec(arr):
    """Full-array block, same block every step (DMA'd once)."""
    zeros = (0,) * arr.ndim
    return pl.BlockSpec(arr.shape, lambda s, _sref, _z=zeros: _z)


# ----------------------------------------------------------------------------
# ObjectDecoder.forward — the whole decode loop runs inside one pallas_call.
# ----------------------------------------------------------------------------
@functools.partial(jax.jit, static_argnames=("max_decode_steps",))
def object_decoder_forward(enc_input, input_hidden, start_ids, graphs, vmask,
                           emb_table, packed, max_decode_steps=2):
    B, H = enc_input.shape
    V = emb_table.shape[0]

    # 2 = valid object allowed by graph, 1 = valid object blocked by graph, 0 = invalid.
    code = vmask * (1.0 + graphs)

    in_arrays = (
        emb_table, enc_input, input_hidden,
        packed["w_i"], packed["w_h"], packed["b"],
        packed["w_out"], packed["b_out"], code,
    )

    grid_spec = pltpu.PrefetchScalarGridSpec(
        num_scalar_prefetch=1,
        grid=(max_decode_steps,),
        in_specs=[_resident_spec(a) for a in in_arrays],
        out_specs=[
            pl.BlockSpec((1, B, V), lambda s, _sref: (s, 0, 0)),  # logits per step
            pl.BlockSpec((1, B, 1), lambda s, _sref: (s, 0, 0)),  # word ids per step
        ],
        scratch_shapes=[
            pltpu.VMEM((B, H), jnp.float32),       # carried hidden
            pltpu.VMEM((B, V), jnp.float32),       # carried token one-hot
            pltpu.VMEM((B, 3 * H), jnp.float32),   # enc contribution to gates
        ],
    )

    logits, words = pl.pallas_call(
        _object_decoder_kernel,
        out_shape=(
            jax.ShapeDtypeStruct((max_decode_steps, B, V), jnp.float32),
            jax.ShapeDtypeStruct((max_decode_steps, B, 1), jnp.int32),
        ),
        grid_spec=grid_spec,
        compiler_params=pltpu.CompilerParams(
            dimension_semantics=("arbitrary",)),   # sequential: state carried per step
    )(start_ids, *in_arrays)

    return logits, words[:, :, 0]


# ----------------------------------------------------------------------------
# Parameter packing (done once, outside the hot path)
# ----------------------------------------------------------------------------
def pack_decoder_params(params):
    H = params["w_hr"].shape[0]
    w_i = jnp.concatenate([params["w_ir"], params["w_iz"], params["w_in"]],
                          axis=1)                                     # (2H, 3H)
    w_h = jnp.concatenate([params["w_hr"], params["w_hz"], params["w_hn"]],
                          axis=1)                                     # (H, 3H)
    b0 = jnp.concatenate([params["b_r"], params["b_z"], params["b_in"]], axis=1)
    b1 = jnp.concatenate([jnp.zeros((1, 2 * H), jnp.float32), params["b_hn"]],
                         axis=1)
    b = jnp.concatenate([b0, b1], axis=0)                             # (2, 3H)
    return {"w_i": w_i, "w_h": w_h, "b": b,
            "w_out": params["w_out"], "b_out": params["b_out"]}


def build_valid_object_mask(type_to_obj_str_luts, batch, vocab_size):
    # Mirrors ObjectDecoder.get_valid_object_mask as a dense 0/1 mask; static
    # per LUT set, so build it once on host and reuse.
    m = np.zeros((batch, vocab_size), np.float32)
    for i, lut in enumerate(type_to_obj_str_luts):
        for k in lut:
            if k != "desc":
                m[i, int(k)] = 1.0
    return jnp.asarray(m)


# ----------------------------------------------------------------------------
# main
# ----------------------------------------------------------------------------
if __name__ == "__main__":
    B, H, V = 2, 32, 128   # batch, hidden_size, output_size (vocab)
    key = jax.random.PRNGKey(0)
    ks = jax.random.split(key, 20)
    s = 0.1

    emb_table = jax.random.normal(ks[0], (V, H), jnp.float32) * s
    params = {
        "w_ir": jax.random.normal(ks[1], (2 * H, H), jnp.float32) * s,
        "w_iz": jax.random.normal(ks[2], (2 * H, H), jnp.float32) * s,
        "w_in": jax.random.normal(ks[3], (2 * H, H), jnp.float32) * s,
        "w_hr": jax.random.normal(ks[4], (H, H), jnp.float32) * s,
        "w_hz": jax.random.normal(ks[5], (H, H), jnp.float32) * s,
        "w_hn": jax.random.normal(ks[6], (H, H), jnp.float32) * s,
        "b_r": jax.random.normal(ks[7], (1, H), jnp.float32) * s,    # = b_ir + b_hr
        "b_z": jax.random.normal(ks[8], (1, H), jnp.float32) * s,    # = b_iz + b_hz
        "b_in": jax.random.normal(ks[9], (1, H), jnp.float32) * s,
        "b_hn": jax.random.normal(ks[10], (1, H), jnp.float32) * s,
        "w_out": jax.random.normal(ks[11], (H, V), jnp.float32) * s,
        "b_out": jax.random.normal(ks[12], (1, V), jnp.float32) * s,
    }
    packed = pack_decoder_params(params)

    enc_input = jax.random.normal(ks[13], (B, H), jnp.float32)      # `input`
    input_hidden = jax.random.normal(ks[14], (B, H), jnp.float32)   # `input_hidden`
    graphs = (jax.random.uniform(ks[15], (B, V)) > 0.3).astype(jnp.float32)

    vocab = {i: f"obj{i}" for i in range(V)}
    vocab_rev = {v: k for k, v in vocab.items()}
    vocab_rev["<s>"] = 1

    type_to_obj_str_luts = [
        {"desc": "room stuff", "5": "ball", "17": "door", "42": "key", "63": "lamp"},
        {"desc": "room stuff", "3": "rope", "8": "chest", "99": "torch", "120": "coin"},
    ]
    vmask = build_valid_object_mask(type_to_obj_str_luts, B, V)   # hoisted, static
    start_ids = jnp.full((1,), vocab_rev["<s>"], jnp.int32)

    all_outputs, all_words = object_decoder_forward(
        enc_input, input_hidden, start_ids, graphs, vmask, emb_table, packed,
        max_decode_steps=2)

    jax.block_until_ready((all_outputs, all_words))
    assert all_outputs.shape == (2, B, V)
    assert all_words.shape == (2, B)
    # Chosen objects must be valid candidates for their batch row.
    w = np.asarray(all_words)
    vm = np.asarray(vmask)
    assert all(vm[b, w[t, b]] == 1.0 for t in range(2) for b in range(B))
    print("KERNEL_OK")
</pallas_src>

<mosaic_0001>
module attributes {stable_mosaic.version = 11 : i64} {
  func.func @_object_decoder_kernel(%arg0: i32, %arg1: memref<1xi32, #tpu.memory_space<smem>>, %arg2: memref<128x32xf32, #tpu.memory_space<vmem>>, %arg3: memref<2x32xf32, #tpu.memory_space<vmem>>, %arg4: memref<2x32xf32, #tpu.memory_space<vmem>>, %arg5: memref<64x96xf32, #tpu.memory_space<vmem>>, %arg6: memref<32x96xf32, #tpu.memory_space<vmem>>, %arg7: memref<2x96xf32, #tpu.memory_space<vmem>>, %arg8: memref<32x128xf32, #tpu.memory_space<vmem>>, %arg9: memref<1x128xf32, #tpu.memory_space<vmem>>, %arg10: memref<2x128xf32, #tpu.memory_space<vmem>>, %arg11: memref<1x2x128xf32, #tpu.memory_space<vmem>>, %arg12: memref<1x2x1xi32, #tpu.memory_space<vmem>>, %arg13: memref<2x32xf32, #tpu.memory_space<vmem>>, %arg14: memref<2x128xf32, #tpu.memory_space<vmem>>, %arg15: memref<2x96xf32, #tpu.memory_space<vmem>>) attributes {dimension_semantics = [#tpu.dimension_semantics<arbitrary>], iteration_bounds = array<i64: 2>, scalar_prefetch = 1 : i64, scratch_operands = 3 : i64, tpu.core_type = #tpu.core_type<tc>, window_params = [{pipeline_mode = #tpu.pipeline_mode<synchronous>, transform_indices = @transform_0, window_bounds = array<i64: 128, 32>}, {pipeline_mode = #tpu.pipeline_mode<synchronous>, transform_indices = @transform_1, window_bounds = array<i64: 2, 32>}, {pipeline_mode = #tpu.pipeline_mode<synchronous>, transform_indices = @transform_2, window_bounds = array<i64: 2, 32>}, {pipeline_mode = #tpu.pipeline_mode<synchronous>, transform_indices = @transform_3, window_bounds = array<i64: 64, 96>}, {pipeline_mode = #tpu.pipeline_mode<synchronous>, transform_indices = @transform_4, window_bounds = array<i64: 32, 96>}, {pipeline_mode = #tpu.pipeline_mode<synchronous>, transform_indices = @transform_5, window_bounds = array<i64: 2, 96>}, {pipeline_mode = #tpu.pipeline_mode<synchronous>, transform_indices = @transform_6, window_bounds = array<i64: 32, 128>}, {pipeline_mode = #tpu.pipeline_mode<synchronous>, transform_indices = @transform_7, window_bounds = array<i64: 1, 128>}, {pipeline_mode = #tpu.pipeline_mode<synchronous>, transform_indices = @transform_8, window_bounds = array<i64: 2, 128>}, {transform_indices = @transform_9, window_bounds = array<i64: 1, 2, 128>}, {transform_indices = @transform_10, window_bounds = array<i64: 1, 2, 1>}]} {
    %c0_i32 = arith.constant 0 : i32
    %0 = arith.cmpi eq, %arg0, %c0_i32 : i32
    %1 = arith.extui %0 : i1 to i32
    %c0_i32_0 = arith.constant 0 : i32
    %2 = arith.cmpi ne, %1, %c0_i32_0 : i32
    scf.if %2 {
      %c0_42 = arith.constant 0 : index
      %c0_43 = arith.constant 0 : index
      %80 = vector.load %arg4[%c0_42, %c0_43] : memref<2x32xf32, #tpu.memory_space<vmem>>, vector<2x32xf32>
      %c0_44 = arith.constant 0 : index
      %c0_45 = arith.constant 0 : index
      %81 = vector.load %arg13[%c0_44, %c0_45] : memref<2x32xf32, #tpu.memory_space<vmem>>, vector<2x32xf32>
      tpu.vector_store %arg13[%c0_44, %c0_45], %80 {strides = array<i32>} : memref<2x32xf32, #tpu.memory_space<vmem>>, vector<2x32xf32>,
      %c0_46 = arith.constant 0 : index
      %82 = memref.load %arg1[%c0_46] : memref<1xi32, #tpu.memory_space<smem>>
      %83 = tpu.iota {dimensions = array<i32: 1>} : vector<2x128xi32>
      %84 = vector.broadcast %82 : i32 to vector<2x128xi32>
      %85 = arith.cmpi eq, %83, %84 : vector<2x128xi32>
      %86 = arith.extui %85 : vector<2x128xi1> to vector<2x128xi32>
      %87 = arith.sitofp %86 : vector<2x128xi32> to vector<2x128xf32>
      %c0_47 = arith.constant 0 : index
      %c0_48 = arith.constant 0 : index
      %88 = vector.load %arg14[%c0_47, %c0_48] : memref<2x128xf32, #tpu.memory_space<vmem>>, vector<2x128xf32>
      tpu.vector_store %arg14[%c0_47, %c0_48], %87 {strides = array<i32>} : memref<2x128xf32, #tpu.memory_space<vmem>>, vector<2x128xf32>,
      %c0_49 = arith.constant 0 : index
      %c0_50 = arith.constant 0 : index
      %89 = vector.load %arg5[%c0_49, %c0_50] : memref<64x96xf32, #tpu.memory_space<vmem>>, vector<64x96xf32>
      %c0_51 = arith.constant 0 : index
      %c0_52 = arith.constant 0 : index
      %90 = vector.load %arg3[%c0_51, %c0_52] : memref<2x32xf32, #tpu.memory_space<vmem>>, vector<2x32xf32>
      %91 = vector.extract_strided_slice %89 {offsets = [32, 0], sizes = [32, 96], strides = [1, 1]} : vector<64x96xf32> to vector<32x96xf32>
      %cst_53 = arith.constant dense<0.000000e+00> : vector<2x96xf32>
      %92 = tpu.matmul %90, %91, %cst_53 {dimension_numbers = #tpu.dot_dimension_numbers<[1], [0], [0], [1], [0, 0, 1, 1], [], []>} : vector<2x32xf32>, vector<32x96xf32>, vector<2x96xf32> -> vector<2x96xf32>
      %c0_54 = arith.constant 0 : index
      %c0_55 = arith.constant 0 : index
      %93 = vector.load %arg15[%c0_54, %c0_55] : memref<2x96xf32, #tpu.memory_space<vmem>>, vector<2x96xf32>
      tpu.vector_store %arg15[%c0_54, %c0_55], %92 {strides = array<i32>} : memref<2x96xf32, #tpu.memory_space<vmem>>, vector<2x96xf32>,
    } else {
    }
    %c0 = arith.constant 0 : index
    %c0_1 = arith.constant 0 : index
    %3 = vector.load %arg14[%c0, %c0_1] : memref<2x128xf32, #tpu.memory_space<vmem>>, vector<2x128xf32>
    %c0_2 = arith.constant 0 : index
    %c0_3 = arith.constant 0 : index
    %4 = vector.load %arg2[%c0_2, %c0_3] : memref<128x32xf32, #tpu.memory_space<vmem>>, vector<128x32xf32>
    %cst = arith.constant dense<0.000000e+00> : vector<2x32xf32>
    %5 = tpu.matmul %3, %4, %cst {dimension_numbers = #tpu.dot_dimension_numbers<[1], [0], [0], [1], [0, 0, 1, 1], [], []>} : vector<2x128xf32>, vector<128x32xf32>, vector<2x32xf32> -> vector<2x32xf32>
    %c0_4 = arith.constant 0 : index
    %c0_5 = arith.constant 0 : index
    %6 = vector.load %arg13[%c0_4, %c0_5] : memref<2x32xf32, #tpu.memory_space<vmem>>, vector<2x32xf32>
    %c0_6 = arith.constant 0 : index
    %c0_7 = arith.constant 0 : index
    %7 = vector.load %arg5[%c0_6, %c0_7] : memref<64x96xf32, #tpu.memory_space<vmem>>, vector<64x96xf32>
    %8 = vector.extract_strided_slice %7 {offsets = [0, 0], sizes = [32, 96], strides = [1, 1]} : vector<64x96xf32> to vector<32x96xf32>
    %cst_8 = arith.constant dense<0.000000e+00> : vector<2x96xf32>
    %9 = tpu.matmul %5, %8, %cst_8 {dimension_numbers = #tpu.dot_dimension_numbers<[1], [0], [0], [1], [0, 0, 1, 1], [], []>} : vector<2x32xf32>, vector<32x96xf32>, vector<2x96xf32> -> vector<2x96xf32>
    %c0_9 = arith.constant 0 : index
    %c0_10 = arith.constant 0 : index
    %10 = vector.load %arg15[%c0_9, %c0_10] : memref<2x96xf32, #tpu.memory_space<vmem>>, vector<2x96xf32>
    %11 = arith.addf %9, %10 : vector<2x96xf32>
    %c0_11 = arith.constant 0 : index
    %c0_12 = arith.constant 0 : index
    %12 = vector.load %arg6[%c0_11, %c0_12] : memref<32x96xf32, #tpu.memory_space<vmem>>, vector<32x96xf32>
    %cst_13 = arith.constant dense<0.000000e+00> : vector<2x96xf32>
    %13 = tpu.matmul %6, %12, %cst_13 {dimension_numbers = #tpu.dot_dimension_numbers<[1], [0], [0], [1], [0, 0, 1, 1], [], []>} : vector<2x32xf32>, vector<32x96xf32>, vector<2x96xf32> -> vector<2x96xf32>
    %c0_14 = arith.constant 0 : index
    %c0_15 = arith.constant 0 : index
    %14 = vector.load %arg7[%c0_14, %c0_15] : memref<2x96xf32, #tpu.memory_space<vmem>>, vector<2x96xf32>
    %15 = vector.extract_strided_slice %14 {offsets = [0, 0], sizes = [1, 96], strides = [1, 1]} : vector<2x96xf32> to vector<1x96xf32>
    %16 = vector.broadcast %15 : vector<1x96xf32> to vector<2x96xf32>
    %17 = arith.addf %11, %16 : vector<2x96xf32>
    %18 = vector.extract_strided_slice %14 {offsets = [1, 0], sizes = [1, 96], strides = [1, 1]} : vector<2x96xf32> to vector<1x96xf32>
    %19 = vector.broadcast %18 : vector<1x96xf32> to vector<2x96xf32>
    %20 = arith.addf %13, %19 : vector<2x96xf32>
    %21 = vector.extract_strided_slice %17 {offsets = [0, 0], sizes = [2, 32], strides = [1, 1]} : vector<2x96xf32> to vector<2x32xf32>
    %22 = vector.extract_strided_slice %20 {offsets = [0, 0], sizes = [2, 32], strides = [1, 1]} : vector<2x96xf32> to vector<2x32xf32>
    %23 = arith.addf %21, %22 : vector<2x32xf32>
    %24 = arith.negf %23 : vector<2x32xf32>
    %25 = math.exp %24 : vector<2x32xf32>
    %cst_16 = arith.constant 1.000000e+00 : f32
    %26 = vector.broadcast %cst_16 : f32 to vector<2x32xf32>
    %27 = arith.addf %26, %25 : vector<2x32xf32>
    %28 = arith.divf %26, %27 : vector<2x32xf32>
    %29 = vector.extract_strided_slice %17 {offsets = [0, 32], sizes = [2, 32], strides = [1, 1]} : vector<2x96xf32> to vector<2x32xf32>
    %30 = vector.extract_strided_slice %20 {offsets = [0, 32], sizes = [2, 32], strides = [1, 1]} : vector<2x96xf32> to vector<2x32xf32>
    %31 = arith.addf %29, %30 : vector<2x32xf32>
    %32 = arith.negf %31 : vector<2x32xf32>
    %33 = math.exp %32 : vector<2x32xf32>
    %cst_17 = arith.constant 1.000000e+00 : f32
    %34 = vector.broadcast %cst_17 : f32 to vector<2x32xf32>
    %35 = arith.addf %34, %33 : vector<2x32xf32>
    %36 = arith.divf %34, %35 : vector<2x32xf32>
    %37 = vector.extract_strided_slice %17 {offsets = [0, 64], sizes = [2, 32], strides = [1, 1]} : vector<2x96xf32> to vector<2x32xf32>
    %38 = vector.extract_strided_slice %20 {offsets = [0, 64], sizes = [2, 32], strides = [1, 1]} : vector<2x96xf32> to vector<2x32xf32>
    %39 = arith.mulf %28, %38 : vector<2x32xf32>
    %40 = arith.addf %37, %39 : vector<2x32xf32>
    %41 = math.tanh %40 : vector<2x32xf32>
    %cst_18 = arith.constant 1.000000e+00 : f32
    %42 = vector.broadcast %cst_18 : f32 to vector<2x32xf32>
    %43 = arith.subf %42, %36 : vector<2x32xf32>
    %44 = arith.mulf %43, %41 : vector<2x32xf32>
    %45 = arith.mulf %36, %6 : vector<2x32xf32>
    %46 = arith.addf %44, %45 : vector<2x32xf32>
    %c0_19 = arith.constant 0 : index
    %c0_20 = arith.constant 0 : index
    %47 = vector.load %arg13[%c0_19, %c0_20] : memref<2x32xf32, #tpu.memory_space<vmem>>, vector<2x32xf32>
    tpu.vector_store %arg13[%c0_19, %c0_20], %46 {strides = array<i32>} : memref<2x32xf32, #tpu.memory_space<vmem>>, vector<2x32xf32>,
    %c0_21 = arith.constant 0 : index
    %c0_22 = arith.constant 0 : index
    %48 = vector.load %arg8[%c0_21, %c0_22] : memref<32x128xf32, #tpu.memory_space<vmem>>, vector<32x128xf32>
    %cst_23 = arith.constant dense<0.000000e+00> : vector<2x128xf32>
    %49 = tpu.matmul %46, %48, %cst_23 {dimension_numbers = #tpu.dot_dimension_numbers<[1], [0], [0], [1], [0, 0, 1, 1], [], []>} : vector<2x32xf32>, vector<32x128xf32>, vector<2x128xf32> -> vector<2x128xf32>
    %c0_24 = arith.constant 0 : index
    %c0_25 = arith.constant 0 : index
    %50 = vector.load %arg9[%c0_24, %c0_25] : memref<1x128xf32, #tpu.memory_space<vmem>>, vector<1x128xf32>
    %51 = vector.broadcast %50 : vector<1x128xf32> to vector<2x128xf32>
    %52 = arith.addf %49, %51 : vector<2x128xf32>
    %53 = vector.shape_cast %52 : vector<2x128xf32> to vector<1x2x128xf32>
    %c0_26 = arith.constant 0 : index
    %c0_27 = arith.constant 0 : index
    %c0_28 = arith.constant 0 : index
    %54 = vector.load %arg11[%c0_26, %c0_27, %c0_28] : memref<1x2x128xf32, #tpu.memory_space<vmem>>, vector<1x2x128xf32>
    tpu.vector_store %arg11[%c0_26, %c0_27, %c0_28], %53 {strides = array<i32>} : memref<1x2x128xf32, #tpu.memory_space<vmem>>, vector<1x2x128xf32>,
    %c0_29 = arith.constant 0 : index
    %c0_30 = arith.constant 0 : index
    %55 = vector.load %arg10[%c0_29, %c0_30] : memref<2x128xf32, #tpu.memory_space<vmem>>, vector<2x128xf32>
    %cst_31 = arith.constant 2.000000e+00 : f32
    %56 = vector.broadcast %cst_31 : f32 to vector<2x128xf32>
    %57 = arith.cmpf oge, %55, %56 : vector<2x128xf32>
    %cst_32 = arith.constant 1.000000e+00 : f32
    %58 = vector.broadcast %cst_32 : f32 to vector<2x128xf32>
    %59 = arith.cmpf oge, %55, %58 : vector<2x128xf32>
    %cst_33 = arith.constant -1.000000e+30 : f32
    %cst_34 = arith.constant -2.000000e+30 : f32
    %60 = vector.broadcast %cst_33 : f32 to vector<2x128xf32>
    %61 = vector.broadcast %cst_34 : f32 to vector<2x128xf32>
    %62 = arith.select %59, %60, %61 : vector<2x128xi1>, vector<2x128xf32>
    %63 = arith.select %57, %52, %62 : vector<2x128xi1>, vector<2x128xf32>
    %cst_35 = arith.constant dense<0xFF800000> : vector<2xf32>
    %64 = vector.multi_reduction <maximumf>, %63, %cst_35 [1] : vector<2x128xf32> to vector<2xf32>
    %65 = vector.shape_cast %64 : vector<2xf32> to vector<2x1xf32>
    %66 = tpu.iota {dimensions = array<i32: 1>} : vector<2x128xi32>
    %67 = vector.broadcast %65 : vector<2x1xf32> to vector<2x128xf32>
    %68 = arith.cmpf oeq, %63, %67 : vector<2x128xf32>
    %c128_i32 = arith.constant 128 : i32
    %69 = vector.broadcast %c128_i32 : i32 to vector<2x128xi32>
    %70 = arith.select %68, %66, %69 : vector<2x128xi1>, vector<2x128xi32>
    %cst_36 = arith.constant dense<2147483647> : vector<2xi32>
    %71 = vector.multi_reduction <minsi>, %70, %cst_36 [1] : vector<2x128xi32> to vector<2xi32>
    %72 = vector.shape_cast %71 : vector<2xi32> to vector<2x1xi32>
    %73 = vector.shape_cast %72 : vector<2x1xi32> to vector<1x2x1xi32>
    %c0_37 = arith.constant 0 : index
    %c0_38 = arith.constant 0 : index
    %c0_39 = arith.constant 0 : index
    %74 = vector.load %arg12[%c0_37, %c0_38, %c0_39] : memref<1x2x1xi32, #tpu.memory_space<vmem>>, vector<1x2x1xi32>
    tpu.vector_store %arg12[%c0_37, %c0_38, %c0_39], %73 {strides = array<i32>} : memref<1x2x1xi32, #tpu.memory_space<vmem>>, vector<1x2x1xi32>,
    %75 = vector.broadcast %72 : vector<2x1xi32> to vector<2x128xi32>
    %76 = arith.cmpi eq, %66, %75 : vector<2x128xi32>
    %77 = arith.extui %76 : vector<2x128xi1> to vector<2x128xi32>
    %78 = arith.sitofp %77 : vector<2x128xi32> to vector<2x128xf32>
    %c0_40 = arith.constant 0 : index
    %c0_41 = arith.constant 0 : index
    %79 = vector.load %arg14[%c0_40, %c0_41] : memref<2x128xf32, #tpu.memory_space<vmem>>, vector<2x128xf32>
    tpu.vector_store %arg14[%c0_40, %c0_41], %78 {strides = array<i32>} : memref<2x128xf32, #tpu.memory_space<vmem>>, vector<2x128xf32>,
    return
  }
  func.func @transform_0(%arg0: i32, %arg1: memref<1xi32, #tpu.memory_space<smem>>) -> (i32, i32) {
    %c0_i32 = arith.constant 0 : i32
    %c0_i32_0 = arith.constant 0 : i32
    %c0_i32_1 = arith.constant 0 : i32
    return %c0_i32, %c0_i32_0 : i32, i32
  }
  func.func @transform_1(%arg0: i32, %arg1: memref<1xi32, #tpu.memory_space<smem>>) -> (i32, i32) {
    %c0_i32 = arith.constant 0 : i32
    %c0_i32_0 = arith.constant 0 : i32
    %c0_i32_1 = arith.constant 0 : i32
    return %c0_i32, %c0_i32_0 : i32, i32
  }
  func.func @transform_2(%arg0: i32, %arg1: memref<1xi32, #tpu.memory_space<smem>>) -> (i32, i32) {
    %c0_i32 = arith.constant 0 : i32
    %c0_i32_0 = arith.constant 0 : i32
    %c0_i32_1 = arith.constant 0 : i32
    return %c0_i32, %c0_i32_0 : i32, i32
  }
  func.func @transform_3(%arg0: i32, %arg1: memref<1xi32, #tpu.memory_space<smem>>) -> (i32, i32) {
    %c0_i32 = arith.constant 0 : i32
    %c0_i32_0 = arith.constant 0 : i32
    %c0_i32_1 = arith.constant 0 : i32
    return %c0_i32, %c0_i32_0 : i32, i32
  }
  func.func @transform_4(%arg0: i32, %arg1: memref<1xi32, #tpu.memory_space<smem>>) -> (i32, i32) {
    %c0_i32 = arith.constant 0 : i32
    %c0_i32_0 = arith.constant 0 : i32
    %c0_i32_1 = arith.constant 0 : i32
    return %c0_i32, %c0_i32_0 : i32, i32
  }
  func.func @transform_5(%arg0: i32, %arg1: memref<1xi32, #tpu.memory_space<smem>>) -> (i32, i32) {
    %c0_i32 = arith.constant 0 : i32
    %c0_i32_0 = arith.constant 0 : i32
    %c0_i32_1 = arith.constant 0 : i32
    return %c0_i32, %c0_i32_0 : i32, i32
  }
  func.func @transform_6(%arg0: i32, %arg1: memref<1xi32, #tpu.memory_space<smem>>) -> (i32, i32) {
    %c0_i32 = arith.constant 0 : i32
    %c0_i32_0 = arith.constant 0 : i32
    %c0_i32_1 = arith.constant 0 : i32
    return %c0_i32, %c0_i32_0 : i32, i32
  }
  func.func @transform_7(%arg0: i32, %arg1: memref<1xi32, #tpu.memory_space<smem>>) -> (i32, i32) {
    %c0_i32 = arith.constant 0 : i32
    %c0_i32_0 = arith.constant 0 : i32
    %c0_i32_1 = arith.constant 0 : i32
    return %c0_i32, %c0_i32_0 : i32, i32
  }
  func.func @transform_8(%arg0: i32, %arg1: memref<1xi32, #tpu.memory_space<smem>>) -> (i32, i32) {
    %c0_i32 = arith.constant 0 : i32
    %c0_i32_0 = arith.constant 0 : i32
    %c0_i32_1 = arith.constant 0 : i32
    return %c0_i32, %c0_i32_0 : i32, i32
  }
  func.func @transform_9(%arg0: i32, %arg1: memref<1xi32, #tpu.memory_space<smem>>) -> (i32, i32, i32) {
    %c0_i32 = arith.constant 0 : i32
    %c0_i32_0 = arith.constant 0 : i32
    %c0_i32_1 = arith.constant 0 : i32
    return %arg0, %c0_i32, %c0_i32_0 : i32, i32, i32
  }
  func.func @transform_10(%arg0: i32, %arg1: memref<1xi32, #tpu.memory_space<smem>>) -> (i32, i32, i32) {
    %c0_i32 = arith.constant 0 : i32
    %c0_i32_0 = arith.constant 0 : i32
    %c0_i32_1 = arith.constant 0 : i32
    return %arg0, %c0_i32, %c0_i32_0 : i32, i32, i32
  }
}

</mosaic_0001>

<llo_original>
// kernel: object_decoder_forward.1
$region0: #{object_decoder_forward.1}
  #allocation0 [shape = 'u32[]', space=smem, size = 0x4, offset = 0x4, fixed_abs, tag = 'smem constant byte address 0x4 - core index']
  #allocation1 [shape = 'u32[144,128]{1,0:T(1,128)}', space=vmem, size = 0x12000, scoped, tag = 'internal scratch']
  #allocation2 [shape = 'f32[2,32]{1,0:T(2,128)}', space=vmem, size = 0x400, scoped, tag = 'scratch operand']
  #allocation3 [shape = 'f32[2,128]{1,0:T(2,128)}', space=vmem, size = 0x400, scoped, tag = 'scratch operand']
  #allocation4 [shape = 'f32[2,96]{1,0:T(2,128)}', space=vmem, size = 0x400, scoped, tag = 'scratch operand']
  #allocation5 [shape = 's32[1]{0}', space=sflag, size = 0x4, scoped, tag = 'scoped memory for object_decoder_forward.1']
  #allocation6 [shape = 's32[1]{0:T(128)S(6)}', space=smem, size = 0x200, scoped, tag = 'prefetched SMEM operand 0']
  %s0 = inlined_call_operand.<no memory space> [shape: s32[1], index: 0, kind: input, shape index: {}]
  %s1 = inlined_call_operand.vmem [shape: f32[128,32], index: 1, kind: input, shape index: {}]
  %s2 = inlined_call_operand.vmem [shape: f32[2,32], index: 2, kind: input, shape index: {}]
  %s3 = inlined_call_operand.vmem [shape: f32[2,32], index: 3, kind: input, shape index: {}]
  %s4 = inlined_call_operand.vmem [shape: f32[64,96], index: 4, kind: input, shape index: {}]
  %s5 = inlined_call_operand.vmem [shape: f32[32,96], index: 5, kind: input, shape index: {}]
  %s6 = inlined_call_operand.vmem [shape: f32[2,96], index: 6, kind: input, shape index: {}]
  %s7 = inlined_call_operand.vmem [shape: f32[32,128], index: 7, kind: input, shape index: {}]
  %s8 = inlined_call_operand.vmem [shape: f32[1,128], index: 8, kind: input, shape index: {}]
  %s9 = inlined_call_operand.vmem [shape: f32[2,128], index: 9, kind: input, shape index: {}]
  %s10 = inlined_call_operand.hbm [shape: f32[2,2,128], index: 10, kind: output, shape index: {0}]
  %s11 = inlined_call_operand.vmem [shape: s32[2,2,1], index: 11, kind: output, shape index: {1}]
  %12 = xla_tuple %s10, %s11
  %s13 = sld [smem:[#allocation0]]
  $region81: #{object_decoder_forward.1} parent=0
    _
  %s15 = ssub.s32 1, %s13
  %s16 = scalar_select 0, %s15, %s13
  %17 = sst [smem:[#allocation6]] %s0
  $region1: #{object_decoder_forward.1} parent=0
    #allocation7 [shape = 'u8[2048]{0}', space=vmem, size = 0x800, scoped, tag = 'output window, operand 0']
    #allocation8 [shape = 's32[2]{0}', space=sflag, size = 0x8, scoped, tag = 'scoped memory for object_decoder_forward.1']
    %18 = vsyncpa [#allocation8], 0
    %s19 = scalar_lea.sflag [#allocation8], 1
    %20 = vsyncpa %s19, 0
    loop: start=0, step=1, limit=4
    $region2: #{object_decoder_forward.1} parent=1 // loop_pre_header
      _
    $region3: #{object_decoder_forward.1} parent=1 // loop_header
      %s22 = sphi 0, %s26
      %p23 = scmp.ge.s32.totalorder %s22, 4
      %s30 = sphi 0, %s30
      %s32 = sphi 0, %s30
      %s33 = sphi 0, %s32
      %s47 = sphi 0, %s33
      %s51 = sphi 0, %s51
      %s53 = sphi 0, %s51
      %s54 = sphi 0, %s53
      %s68 = sphi 0, %s54
      %s72 = sphi 0, %s72
      %s74 = sphi 0, %s72
      %s75 = sphi 0, %s74
      %s89 = sphi 0, %s75
      %s93 = sphi 0, %s93
      %s95 = sphi 0, %s93
      %s96 = sphi 0, %s95
      %s110 = sphi 0, %s96
      %s114 = sphi 0, %s114
      %s116 = sphi 0, %s114
      %s117 = sphi 0, %s116
      %s131 = sphi 0, %s117
      %s135 = sphi 0, %s135
      %s137 = sphi 0, %s135
      %s138 = sphi 0, %s137
      %s152 = sphi 0, %s138
      %s156 = sphi 0, %s156
      %s158 = sphi 0, %s156
      %s159 = sphi 0, %s158
      %s173 = sphi 0, %s159
      %s177 = sphi 0, %s177
      %s179 = sphi 0, %s177
      %s180 = sphi 0, %s179
      %s194 = sphi 0, %s180
      %s198 = sphi 0, %s198
      %s200 = sphi 0, %s198
      %s201 = sphi 0, %s200
      %s215 = sphi 0, %s201
      %s221 = sphi 0, %s223
      %s224 = sphi 0, %s221
      %s225 = sphi 0, %s224
      %s241 = sphi 0, %s225
      %s247 = sphi 0, %s249
      %s250 = sphi 0, %s247
      %s251 = sphi 0, %s250
      %s267 = sphi 0, %s251
    $region4: #{object_decoder_forward.1} parent=1 // loop_header_branch
      %25 = sbr.rel (%p23) target = $region8
    $region5: #{object_decoder_forward.1} parent=1 // loop_body
      %s27 = ssub.s32 %s22, 1
      %s28 = ssub.s32 %s22, 2
      %s29 = sadd.s32 %s22, 1
      %s31 = sadd.s32 %s30, 1
      %p34 = scmp.eq.s32.totalorder %s22, 1
      %p35 = scmp.ne.s32.totalorder %s30, %s32
      %p36 = scmp.eq.s32.totalorder %s22, 0
      %p37 = por %p35, %p36
      %p38 = scmp.ne.s32.totalorder %s30, %s32
      %p39 = scmp.eq.s32.totalorder %s27, 1
      %p40 = por %p38, %p39
      %p41 = scmp.ne.s32.totalorder %s32, %s33
      %p42 = scmp.eq.s32.totalorder %s27, 0
      %p43 = por %p41, %p42
      %p44 = scmp.ne.s32.totalorder %s32, %s33
      %p45 = scmp.eq.s32.totalorder %s28, 1
      %p46 = por %p44, %p45
      %p48 = scmp.ne.s32.totalorder %s33, %s47
      %p49 = scmp.eq.s32.totalorder %s28, 0
      %p50 = por %p48, %p49
      %s52 = sadd.s32 %s51, 1
      %p55 = scmp.eq.s32.totalorder %s22, 1
      %p56 = scmp.ne.s32.totalorder %s51, %s53
      %p57 = scmp.eq.s32.totalorder %s22, 0
      %p58 = por %p56, %p57
      %p59 = scmp.ne.s32.totalorder %s51, %s53
      %p60 = scmp.eq.s32.totalorder %s27, 1
      %p61 = por %p59, %p60
      %p62 = scmp.ne.s32.totalorder %s53, %s54
      %p63 = scmp.eq.s32.totalorder %s27, 0
      %p64 = por %p62, %p63
      %p65 = scmp.ne.s32.totalorder %s53, %s54
      %p66 = scmp.eq.s32.totalorder %s28, 1
      %p67 = por %p65, %p66
      %p69 = scmp.ne.s32.totalorder %s54, %s68
      %p70 = scmp.eq.s32.totalorder %s28, 0
      %p71 = por %p69, %p70
      %s73 = sadd.s32 %s72, 1
      %p76 = scmp.eq.s32.totalorder %s22, 1
      %p77 = scmp.ne.s32.totalorder %s72, %s74
      %p78 = scmp.eq.s32.totalorder %s22, 0
      %p79 = por %p77, %p78
      %p80 = scmp.ne.s32.totalorder %s72, %s74
      %p81 = scmp.eq.s32.totalorder %s27, 1
      %p82 = por %p80, %p81
      %p83 = scmp.ne.s32.totalorder %s74, %s75
      %p84 = scmp.eq.s32.totalorder %s27, 0
      %p85 = por %p83, %p84
      %p86 = scmp.ne.s32.totalorder %s74, %s75
      %p87 = scmp.eq.s32.totalorder %s28, 1
      %p88 = por %p86, %p87
      %p90 = scmp.ne.s32.totalorder %s75, %s89
      %p91 = scmp.eq.s32.totalorder %s28, 0
      %p92 = por %p90, %p91
      %s94 = sadd.s32 %s93, 1
      %p97 = scmp.eq.s32.totalorder %s22, 1
      %p98 = scmp.ne.s32.totalorder %s93, %s95
      %p99 = scmp.eq.s32.totalorder %s22, 0
      %p100 = por %p98, %p99
      %p101 = scmp.ne.s32.totalorder %s93, %s95
      %p102 = scmp.eq.s32.totalorder %s27, 1
      %p103 = por %p101, %p102
      %p104 = scmp.ne.s32.totalorder %s95, %s96
      %p105 = scmp.eq.s32.totalorder %s27, 0
      %p106 = por %p104, %p105
      %p107 = scmp.ne.s32.totalorder %s95, %s96
      %p108 = scmp.eq.s32.totalorder %s28, 1
      %p109 = por %p107, %p108
      %p111 = scmp.ne.s32.totalorder %s96, %s110
      %p112 = scmp.eq.s32.totalorder %s28, 0
      %p113 = por %p111, %p112
      %s115 = sadd.s32 %s114, 1
      %p118 = scmp.eq.s32.totalorder %s22, 1
      %p119 = scmp.ne.s32.totalorder %s114, %s116
      %p120 = scmp.eq.s32.totalorder %s22, 0
      %p121 = por %p119, %p120
      %p122 = scmp.ne.s32.totalorder %s114, %s116
      %p123 = scmp.eq.s32.totalorder %s27, 1
      %p124 = por %p122, %p123
      %p125 = scmp.ne.s32.totalorder %s116, %s117
      %p126 = scmp.eq.s32.totalorder %s27, 0
      %p127 = por %p125, %p126
      %p128 = scmp.ne.s32.totalorder %s116, %s117
      %p129 = scmp.eq.s32.totalorder %s28, 1
      %p130 = por %p128, %p129
      %p132 = scmp.ne.s32.totalorder %s117, %s131
      %p133 = scmp.eq.s32.totalorder %s28, 0
      %p134 = por %p132, %p133
      %s136 = sadd.s32 %s135, 1
      %p139 = scmp.eq.s32.totalorder %s22, 1
      %p140 = scmp.ne.s32.totalorder %s135, %s137
      %p141 = scmp.eq.s32.totalorder %s22, 0
      %p142 = por %p140, %p141
      %p143 = scmp.ne.s32.totalorder %s135, %s137
      %p144 = scmp.eq.s32.totalorder %s27, 1
      %p145 = por %p143, %p144
      %p146 = scmp.ne.s32.totalorder %s137, %s138
      %p147 = scmp.eq.s32.totalorder %s27, 0
      %p148 = por %p146, %p147
      %p149 = scmp.ne.s32.totalorder %s137, %s138
      %p150 = scmp.eq.s32.totalorder %s28, 1
      %p151 = por %p149, %p150
      %p153 = scmp.ne.s32.totalorder %s138, %s152
      %p154 = scmp.eq.s32.totalorder %s28, 0
      %p155 = por %p153, %p154
      %s157 = sadd.s32 %s156, 1
      %p160 = scmp.eq.s32.totalorder %s22, 1
      %p161 = scmp.ne.s32.totalorder %s156, %s158
      %p162 = scmp.eq.s32.totalorder %s22, 0
      %p163 = por %p161, %p162
      %p164 = scmp.ne.s32.totalorder %s156, %s158
      %p165 = scmp.eq.s32.totalorder %s27, 1
      %p166 = por %p164, %p165
      %p167 = scmp.ne.s32.totalorder %s158, %s159
      %p168 = scmp.eq.s32.totalorder %s27, 0
      %p169 = por %p167, %p168
      %p170 = scmp.ne.s32.totalorder %s158, %s159
      %p171 = scmp.eq.s32.totalorder %s28, 1
      %p172 = por %p170, %p171
      %p174 = scmp.ne.s32.totalorder %s159, %s173
      %p175 = scmp.eq.s32.totalorder %s28, 0
      %p176 = por %p174, %p175
      %s178 = sadd.s32 %s177, 1
      %p181 = scmp.eq.s32.totalorder %s22, 1
      %p182 = scmp.ne.s32.totalorder %s177, %s179
      %p183 = scmp.eq.s32.totalorder %s22, 0
      %p184 = por %p182, %p183
      %p185 = scmp.ne.s32.totalorder %s177, %s179
      %p186 = scmp.eq.s32.totalorder %s27, 1
      %p187 = por %p185, %p186
      %p188 = scmp.ne.s32.totalorder %s179, %s180
      %p189 = scmp.eq.s32.totalorder %s27, 0
      %p190 = por %p188, %p189
      %p191 = scmp.ne.s32.totalorder %s179, %s180
      %p192 = scmp.eq.s32.totalorder %s28, 1
      %p193 = por %p191, %p192
      %p195 = scmp.ne.s32.totalorder %s180, %s194
      %p196 = scmp.eq.s32.totalorder %s28, 0
      %p197 = por %p195, %p196
      %s199 = sadd.s32 %s198, 1
      %p202 = scmp.eq.s32.totalorder %s22, 1
      %p203 = scmp.ne.s32.totalorder %s198, %s200
      %p204 = scmp.eq.s32.totalorder %s22, 0
      %p205 = por %p203, %p204
      %p206 = scmp.ne.s32.totalorder %s198, %s200
      %p207 = scmp.eq.s32.totalorder %s27, 1
      %p208 = por %p206, %p207
      %p209 = scmp.ne.s32.totalorder %s200, %s201
      %p210 = scmp.eq.s32.totalorder %s27, 0
      %p211 = por %p209, %p210
      %p212 = scmp.ne.s32.totalorder %s200, %s201
      %p213 = scmp.eq.s32.totalorder %s28, 1
      %p214 = por %p212, %p213
      %p216 = scmp.ne.s32.totalorder %s201, %s215
      %p217 = scmp.eq.s32.totalorder %s28, 0
      %p218 = por %p216, %p217
      %s219 = ssub.s32 %s22, %s29
      %p220 = scmp.eq.s32.totalorder %s219, 0
      %s222 = sadd.s32 %s221, 1
      %s223 = scalar_select %p220, %s221, %s222
      %p226 = pneg %p220
      %p227 = scmp.eq.s32.totalorder %s22, 1
      %p228 = por %p226, %p227
      %p229 = scmp.ne.s32.totalorder %s221, %s224
      %p230 = scmp.eq.s32.totalorder %s22, 0
      %p231 = por %p229, %p230
      %p232 = scmp.ne.s32.totalorder %s221, %s224
      %p233 = scmp.eq.s32.totalorder %s27, 1
      %p234 = por %p232, %p233
      %p235 = scmp.ne.s32.totalorder %s224, %s225
      %p236 = scmp.eq.s32.totalorder %s27, 0
      %p237 = por %p235, %p236
      %p238 = scmp.ne.s32.totalorder %s224, %s225
      %p239 = scmp.eq.s32.totalorder %s28, 1
      %p240 = por %p238, %p239
      %p242 = scmp.ne.s32.totalorder %s225, %s241
      %p243 = scmp.eq.s32.totalorder %s28, 0
      %p244 = por %p242, %p243
      %s245 = ssub.s32 %s22, %s29
      %p246 = scmp.eq.s32.totalorder %s245, 0
      %s248 = sadd.s32 %s247, 1
      %s249 = scalar_select %p246, %s247, %s248
      %p252 = pneg %p246
      %p253 = scmp.eq.s32.totalorder %s22, 1
      %p254 = por %p252, %p253
      %p255 = scmp.ne.s32.totalorder %s247, %s250
      %p256 = scmp.eq.s32.totalorder %s22, 0
      %p257 = por %p255, %p256
      %p258 = scmp.ne.s32.totalorder %s247, %s250
      %p259 = scmp.eq.s32.totalorder %s27, 1
      %p260 = por %p258, %p259
      %p261 = scmp.ne.s32.totalorder %s250, %s251
      %p262 = scmp.eq.s32.totalorder %s27, 0
      %p263 = por %p261, %p262
      %p264 = scmp.ne.s32.totalorder %s250, %s251
      %p265 = scmp.eq.s32.totalorder %s28, 1
      %p266 = por %p264, %p265
      %p268 = scmp.ne.s32.totalorder %s251, %s267
      %p269 = scmp.eq.s32.totalorder %s28, 0
      %p270 = por %p268, %p269
      %p271 = scmp.le.s32.totalorder 1, %s22
      %p272 = scmp.lt.s32.totalorder %s22, 3
      %p273 = pnand %p271, %p272
      %p274 = pneg %p273
      // Predicated region
      $region9: #{object_decoder_forward.1} parent=5 // pred_check
        _
      $region10: #{object_decoder_forward.1} parent=5 // pred_check_branch
        %276 = sbr.rel (%p273) target = $region12
      $region11: #{object_decoder_forward.1} parent=5 // pred_region
        %s277 = ssub.s32 %s22, 1
        // Predicated region
        $region13: #{object_decoder_forward.1} parent=11 // pred_check
          %p278 = pneg %p43
        $region14: #{object_decoder_forward.1} parent=11 // pred_check_branch
          %280 = sbr.rel (%p278) target = $region16
        $region15: #{object_decoder_forward.1} parent=11 // pred_region
          _
        $region16: #{object_decoder_forward.1} parent=11 // pred_fallthru
          _
        // Predicated region
        $region17: #{object_decoder_forward.1} parent=11 // pred_check
          %p281 = pneg %p64
        $region18: #{object_decoder_forward.1} parent=11 // pred_check_branch
          %283 = sbr.rel (%p281) target = $region20
        $region19: #{object_decoder_forward.1} parent=11 // pred_region
          _
        $region20: #{object_decoder_forward.1} parent=11 // pred_fallthru
          _
        // Predicated region
        $region21: #{object_decoder_forward.1} parent=11 // pred_check
          %p284 = pneg %p85
        $region22: #{object_decoder_forward.1} parent=11 // pred_check_branch
          %286 = sbr.rel (%p284) target = $region24
        $region23: #{object_decoder_forward.1} parent=11 // pred_region
          _
        $region24: #{object_decoder_forward.1} parent=11 // pred_fallthru
          _
        // Predicated region
        $region25: #{object_decoder_forward.1} parent=11 // pred_check
          %p287 = pneg %p106
        $region26: #{object_decoder_forward.1} parent=11 // pred_check_branch
          %289 = sbr.rel (%p287) target = $region28
        $region27: #{object_decoder_forward.1} parent=11 // pred_region
          _
        $region28: #{object_decoder_forward.1} parent=11 // pred_fallthru
          _
        // Predicated region
        $region29: #{object_decoder_forward.1} parent=11 // pred_check
          %p290 = pneg %p127
        $region30: #{object_decoder_forward.1} parent=11 // pred_check_branch
          %292 = sbr.rel (%p290) target = $region32
        $region31: #{object_decoder_forward.1} parent=11 // pred_region
          _
        $region32: #{object_decoder_forward.1} parent=11 // pred_fallthru
          _
        // Predicated region
        $region33: #{object_decoder_forward.1} parent=11 // pred_check
          %p293 = pneg %p148
        $region34: #{object_decoder_forward.1} parent=11 // pred_check_branch
          %295 = sbr.rel (%p293) target = $region36
        $region35: #{object_decoder_forward.1} parent=11 // pred_region
          _
        $region36: #{object_decoder_forward.1} parent=11 // pred_fallthru
          _
        // Predicated region
        $region37: #{object_decoder_forward.1} parent=11 // pred_check
          %p296 = pneg %p169
        $region38: #{object_decoder_forward.1} parent=11 // pred_check_branch
          %298 = sbr.rel (%p296) target = $region40
        $region39: #{object_decoder_forward.1} parent=11 // pred_region
          _
        $region40: #{object_decoder_forward.1} parent=11 // pred_fallthru
          _
        // Predicated region
        $region41: #{object_decoder_forward.1} parent=11 // pred_check
          %p299 = pneg %p190
        $region42: #{object_decoder_forward.1} parent=11 // pred_check_branch
          %301 = sbr.rel (%p299) target = $region44
        $region43: #{object_decoder_forward.1} parent=11 // pred_region
          _
        $region44: #{object_decoder_forward.1} parent=11 // pred_fallthru
          _
        // Predicated region
        $region45: #{object_decoder_forward.1} parent=11 // pred_check
          %p302 = pneg %p211
        $region46: #{object_decoder_forward.1} parent=11 // pred_check_branch
          %304 = sbr.rel (%p302) target = $region48
        $region47: #{object_decoder_forward.1} parent=11 // pred_region
          _
        $region48: #{object_decoder_forward.1} parent=11 // pred_fallthru
          _
      $region12: #{object_decoder_forward.1} parent=5 // pred_fallthru
        _
      %p305 = scmp.lt.s32.totalorder %s22, 2
      // Predicated region
      $region49: #{object_decoder_forward.1} parent=5 // pred_check
        %p306 = pneg %p305
      $region50: #{object_decoder_forward.1} parent=5 // pred_check_branch
        %308 = sbr.rel (%p306) target = $region52
      $region51: #{object_decoder_forward.1} parent=5 // pred_region
        _
      $region52: #{object_decoder_forward.1} parent=5 // pred_fallthru
        _
      %p309 = scmp.le.s32.totalorder 1, %s22
      %p310 = scmp.lt.s32.totalorder %s22, 3
      %p311 = pnand %p309, %p310
      %p312 = pneg %p311
      // Predicated region
      $region53: #{object_decoder_forward.1} parent=5 // pred_check
        _
      $region54: #{object_decoder_forward.1} parent=5 // pred_check_branch
        %314 = sbr.rel (%p311) target = $region56
      $region55: #{object_decoder_forward.1} parent=5 // pred_region
        %s315 = ssub.s32 %s22, 1
        %p316 = pneg %p43
        %p317 = pneg %p40
        %p318 = pneg %p64
        %p319 = pneg %p61
        %p320 = pneg %p85
        %p321 = pneg %p82
        %p322 = pneg %p106
        %p323 = pneg %p103
        %p324 = pneg %p127
        %p325 = pneg %p124
        %p326 = pneg %p148
        %p327 = pneg %p145
        %p328 = pneg %p169
        %p329 = pneg %p166
        %p330 = pneg %p190
        %p331 = pneg %p187
        %p332 = pneg %p211
        %p333 = pneg %p208
        %p334 = pneg %p237
        %p335 = pneg %p234
        %s336 = sand.u32 %s224, 1
        %s337 = scalar_lea.sflag [#allocation8], %s336
        %s338 = sand.u32 %s224, 1
        %s339 = smul.addr %s338, 2
        %s340 = scalar_lea.vmem [#allocation7], %s339
        %p341 = pneg %p263
        %p342 = pneg %p260
        %p343 = scmp.lt.s32.totalorder %s27, 1
        %s344 = scalar_select %p343, %s27, 1
        %s345 = smul.addr %s344, 2
        %s346 = scalar_lea.vmem %s11, %s345
        %p347 = scmp.lt.s32.totalorder %s27, 1
        %s348 = scalar_select %p347, %s27, 1
        %s349 = smul.addr %s348, 2
        %s350 = scalar_lea.vmem %s11, %s349
        %p351 = scmp.eq.s32.totalorder %s27, 0
        // Predicated region
        $region57: #{object_decoder_forward.1} parent=55 // pred_check
          %p352 = pneg %p351
        $region58: #{object_decoder_forward.1} parent=55 // pred_check_branch
          %354 = sbr.rel (%p352) target = $region60
        $region59: #{object_decoder_forward.1} parent=55 // pred_region
          %v355 = vld [vmem:[%s3] sm:$0x3]
          %vm356 = vcmask 254976
          %357 = vst.msk [vmem:[#allocation2] sm:$0x3] %vm356, %v355
          %s358 = sld [smem:[#allocation6]]
          %v359 = vlaneseq
          %v360 = vand.u32 %v359, 127
          %v361 = vstv %s358
          %vm362 = vcmp.eq.s32.totalorder %v360, %v361
          %v363 = vsel %vm362, 1, 0
          %v364 = vcvt.s32.f32 %v363
          %365 = vst [vmem:[#allocation3] sm:$0x3] %v364
          %v366 = vld [vmem:[%s4 + $0x20] sm:$0xff]
          %v367 = vld [vmem:[%s4 + $0x28] sm:$0xff]
          %v368 = vld [vmem:[%s4 + $0x30] sm:$0xff]
          %v369 = vld [vmem:[%s4 + $0x38] sm:$0xff]
          %v370 = vld [vmem:[%s2] sm:$0x3]
          %vm371 = vcmask 261120
          %v373 = vsel %vm371, %v370, 0
          %375 = vmatprep.subr.mxu0 0.0
          %376 = vmatpush1.msra.mxu0 %v366
          %377 = vmatprep.subr.mxu0 0.0
          %378 = vmatpush1.msra.mxu0 %v367
          %379 = vmatprep.subr.mxu0 0.0
          %380 = vmatpush1.msra.mxu0 %v368
          %381 = vmatprep.subr.mxu0 0.0
          %382 = vmatpush1.msra.mxu0 %v369
          %383 = vmatprep.subr.mxu0 0.0
          %384 = vmatpush1.msra.mxu0 0.0
          %385 = vmatprep.subr.mxu0 0.0
          %386 = vmatpush1.msra.mxu0 0.0
          %387 = vmatprep.subr.mxu0 0.0
          %388 = vmatpush1.msra.mxu0 0.0
          %389 = vmatprep.subr.mxu0 0.0
          %390 = vmatpush1.msra.mxu0 0.0
          %391 = vmatprep.subr.mxu0 0.0
          %392 = vmatpush1.msra.mxu0 0.0
          %393 = vmatprep.subr.mxu0 0.0
          %394 = vmatpush1.msra.mxu0 0.0
          %395 = vmatprep.subr.mxu0 0.0
          %396 = vmatpush1.msra.mxu0 0.0
          %397 = vmatprep.subr.mxu0 0.0
          %398 = vmatpush1.msra.mxu0 0.0
          %399 = vmatprep.subr.mxu0 0.0
          %400 = vmatpush1.msra.mxu0 0.0
          %401 = vmatprep.subr.mxu0 0.0
          %402 = vmatpush1.msra.mxu0 0.0
          %403 = vmatprep.subr.mxu0 0.0
          %404 = vmatpush1.msra.mxu0 0.0
          %405 = vmatprep.subr.mxu0 0.0
          %406 = vmatpush1.msra.mxu0 0.0
          %407 = vmatprep.subr.mxu0 0.0
          %408 = vmatpush1.msra.mxu0 0.0
          %409 = vmatprep.subr.mxu0 0.0
          %410 = vmatpush1.msra.mxu0 0.0
          %411 = vmatprep.subr.mxu0 0.0
          %412 = vmatpush1.msra.mxu0 0.0
          %413 = vmatprep.subr.mxu0 0.0
          %414 = vmatpush1.msra.mxu0 0.0
          %415 = vmatprep.subr.mxu0 0.0
          %416 = vmatpush1.msra.mxu0 0.0
          %417 = vmatprep.subr.mxu0 0.0
          %418 = vmatpush1.msra.mxu0 0.0
          %419 = vmatprep.subr.mxu0 0.0
          %420 = vmatpush1.msra.mxu0 0.0
          %421 = vmatprep.subr.mxu0 0.0
          %422 = vmatpush1.msra.mxu0 0.0
          %423 = vmatprep.subr.mxu0 0.0
          %424 = vmatpush1.msra.mxu0 0.0
          %425 = vmatprep.subr.mxu0 0.0
          %426 = vmatpush1.msra.mxu0 0.0
          %427 = vmatprep.subr.mxu0 0.0
          %428 = vmatpush1.msra.mxu0 0.0
          %429 = vmatprep.subr.mxu0 0.0
          %430 = vmatpush1.msra.mxu0 0.0
          %431 = vmatprep.subr.mxu0 0.0
          %432 = vmatpush1.msra.mxu0 0.0
          %433 = vmatprep.subr.mxu0 0.0
          %434 = vmatpush1.msra.mxu0 0.0
          %435 = vmatprep.subr.mxu0 0.0
          %436 = vmatpush1.msra.mxu0 0.0
          %437 = vmatprep.subr.mxu0 0.0
          %438 = vmatpush1.msra.mxu0 0.0
          %439 = vmatprep.mubr.f32.mxu0 0.0
          %440 = vmatmul.mubr.f32.gmra.mrb[0].mxu0 %v373
          %v441 = vpop.f32.mrb[0].mxu0
          %v442 = vadd.f32 0.0, %v441
          %v443 = vpop.f32.mrb[0].mxu0
          %444 = vdwg.mxu0
          %vm445 = vcmask 779264
          %446 = vst.msk [vmem:[#allocation4] sm:$0x3] %vm445, %v442
        $region60: #{object_decoder_forward.1} parent=55 // pred_fallthru
          _
        %v447 = vld [vmem:[#allocation3] sm:$0x3]
        %v448 = vld [vmem:[%s1] sm:$0xff]
        %v449 = vld [vmem:[%s1 + $0x8] sm:$0xff]
        %v450 = vld [vmem:[%s1 + $0x10] sm:$0xff]
        %v451 = vld [vmem:[%s1 + $0x18] sm:$0xff]
        %v452 = vld [vmem:[%s1 + $0x20] sm:$0xff]
        %v453 = vld [vmem:[%s1 + $0x28] sm:$0xff]
        %v454 = vld [vmem:[%s1 + $0x30] sm:$0xff]
        %v455 = vld [vmem:[%s1 + $0x38] sm:$0xff]
        %v456 = vld [vmem:[%s1 + $0x40] sm:$0xff]
        %v457 = vld [vmem:[%s1 + $0x48] sm:$0xff]
        %v458 = vld [vmem:[%s1 + $0x50] sm:$0xff]
        %v459 = vld [vmem:[%s1 + $0x58] sm:$0xff]
        %v460 = vld [vmem:[%s1 + $0x60] sm:$0xff]
        %v461 = vld [vmem:[%s1 + $0x68] sm:$0xff]
        %v462 = vld [vmem:[%s1 + $0x70] sm:$0xff]
        %v463 = vld [vmem:[%s1 + $0x78] sm:$0xff]
        %464 = vmatprep.subr.mxu0 0.0
        %465 = vmatpush1.msra.mxu0 %v448
        %466 = vmatprep.subr.mxu0 0.0
        %467 = vmatpush1.msra.mxu0 %v449
        %468 = vmatprep.subr.mxu0 0.0
        %469 = vmatpush1.msra.mxu0 %v450
        %470 = vmatprep.subr.mxu0 0.0
        %471 = vmatpush1.msra.mxu0 %v451
        %472 = vmatprep.subr.mxu0 0.0
        %473 = vmatpush1.msra.mxu0 %v452
        %474 = vmatprep.subr.mxu0 0.0
        %475 = vmatpush1.msra.mxu0 %v453
        %476 = vmatprep.subr.mxu0 0.0
        %477 = vmatpush1.msra.mxu0 %v454
        %478 = vmatprep.subr.mxu0 0.0
        %479 = vmatpush1.msra.mxu0 %v455
        %480 = vmatprep.subr.mxu0 0.0
        %481 = vmatpush1.msra.mxu0 %v456
        %482 = vmatprep.subr.mxu0 0.0
        %483 = vmatpush1.msra.mxu0 %v457
        %484 = vmatprep.subr.mxu0 0.0
        %485 = vmatpush1.msra.mxu0 %v458
        %486 = vmatprep.subr.mxu0 0.0
        %487 = vmatpush1.msra.mxu0 %v459
        %488 = vmatprep.subr.mxu0 0.0
        %489 = vmatpush1.msra.mxu0 %v460
        %490 = vmatprep.subr.mxu0 0.0
        %491 = vmatpush1.msra.mxu0 %v461
        %492 = vmatprep.subr.mxu0 0.0
        %493 = vmatpush1.msra.mxu0 %v462
        %494 = vmatprep.subr.mxu0 0.0
        %495 = vmatpush1.msra.mxu0 %v463
        %496 = vmatprep.subr.mxu0 0.0
        %497 = vmatpush1.msra.mxu0 0.0
        %498 = vmatprep.subr.mxu0 0.0
        %499 = vmatpush1.msra.mxu0 0.0
        %500 = vmatprep.subr.mxu0 0.0
        %501 = vmatpush1.msra.mxu0 0.0
        %502 = vmatprep.subr.mxu0 0.0
        %503 = vmatpush1.msra.mxu0 0.0
        %504 = vmatprep.subr.mxu0 0.0
        %505 = vmatpush1.msra.mxu0 0.0
        %506 = vmatprep.subr.mxu0 0.0
        %507 = vmatpush1.msra.mxu0 0.0
        %508 = vmatprep.subr.mxu0 0.0
        %509 = vmatpush1.msra.mxu0 0.0
        %510 = vmatprep.subr.mxu0 0.0
        %511 = vmatpush1.msra.mxu0 0.0
        %512 = vmatprep.subr.mxu0 0.0
        %513 = vmatpush1.msra.mxu0 0.0
        %514 = vmatprep.subr.mxu0 0.0
        %515 = vmatpush1.msra.mxu0 0.0
        %516 = vmatprep.subr.mxu0 0.0
        %517 = vmatpush1.msra.mxu0 0.0
        %518 = vmatprep.subr.mxu0 0.0
        %519 = vmatpush1.msra.mxu0 0.0
        %520 = vmatprep.subr.mxu0 0.0
        %521 = vmatpush1.msra.mxu0 0.0
        %522 = vmatprep.subr.mxu0 0.0
        %523 = vmatpush1.msra.mxu0 0.0
        %524 = vmatprep.subr.mxu0 0.0
        %525 = vmatpush1.msra.mxu0 0.0
        %526 = vmatprep.subr.mxu0 0.0
        %527 = vmatpush1.msra.mxu0 0.0
        %528 = vmatprep.mubr.f32.mxu0 0.0
        %529 = vmatmul.mubr.f32.gmra.mrb[0].mxu0 %v447
        %v530 = vpop.f32.mrb[0].mxu0
        %v531 = vadd.f32 0.0, %v530
        %v532 = vpop.f32.mrb[0].mxu0
        %533 = vdwg.mxu0
        %v534 = vld [vmem:[#allocation2] sm:$0x3]
        %v535 = vld [vmem:[%s4] sm:$0xff]
        %v536 = vld [vmem:[%s4 + $0x8] sm:$0xff]
        %v537 = vld [vmem:[%s4 + $0x10] sm:$0xff]
        %v538 = vld [vmem:[%s4 + $0x18] sm:$0xff]
        %v539 = vld [vmem:[#allocation4] sm:$0x3]
        %vm540 = vcmask 261120
        %v542 = vsel %vm540, %v531, 0
        %544 = vmatprep.subr.mxu0 0.0
        %545 = vmatpush1.msra.mxu0 %v535
        %546 = vmatprep.subr.mxu0 0.0
        %547 = vmatpush1.msra.mxu0 %v536
        %548 = vmatprep.subr.mxu0 0.0
        %549 = vmatpush1.msra.mxu0 %v537
        %550 = vmatprep.subr.mxu0 0.0
        %551 = vmatpush1.msra.mxu0 %v538
        %552 = vmatprep.subr.mxu0 0.0
        %553 = vmatpush1.msra.mxu0 0.0
        %554 = vmatprep.subr.mxu0 0.0
        %555 = vmatpush1.msra.mxu0 0.0
        %556 = vmatprep.subr.mxu0 0.0
        %557 = vmatpush1.msra.mxu0 0.0
        %558 = vmatprep.subr.mxu0 0.0
        %559 = vmatpush1.msra.mxu0 0.0
        %560 = vmatprep.subr.mxu0 0.0
        %561 = vmatpush1.msra.mxu0 0.0
        %562 = vmatprep.subr.mxu0 0.0
        %563 = vmatpush1.msra.mxu0 0.0
        %564 = vmatprep.subr.mxu0 0.0
        %565 = vmatpush1.msra.mxu0 0.0
        %566 = vmatprep.subr.mxu0 0.0
        %567 = vmatpush1.msra.mxu0 0.0
        %568 = vmatprep.subr.mxu0 0.0
        %569 = vmatpush1.msra.mxu0 0.0
        %570 = vmatprep.subr.mxu0 0.0
        %571 = vmatpush1.msra.mxu0 0.0
        %572 = vmatprep.subr.mxu0 0.0
        %573 = vmatpush1.msra.mxu0 0.0
        %574 = vmatprep.subr.mxu0 0.0
        %575 = vmatpush1.msra.mxu0 0.0
        %576 = vmatprep.subr.mxu0 0.0
        %577 = vmatpush1.msra.mxu0 0.0
        %578 = vmatprep.subr.mxu0 0.0
        %579 = vmatpush1.msra.mxu0 0.0
        %580 = vmatprep.subr.mxu0 0.0
        %581 = vmatpush1.msra.mxu0 0.0
        %582 = vmatprep.subr.mxu0 0.0
        %583 = vmatpush1.msra.mxu0 0.0
        %584 = vmatprep.subr.mxu0 0.0
        %585 = vmatpush1.msra.mxu0 0.0
        %586 = vmatprep.subr.mxu0 0.0
        %587 = vmatpush1.msra.mxu0 0.0
        %588 = vmatprep.subr.mxu0 0.0
        %589 = vmatpush1.msra.mxu0 0.0
        %590 = vmatprep.subr.mxu0 0.0
        %591 = vmatpush1.msra.mxu0 0.0
        %592 = vmatprep.subr.mxu0 0.0
        %593 = vmatpush1.msra.mxu0 0.0
        %594 = vmatprep.subr.mxu0 0.0
        %595 = vmatpush1.msra.mxu0 0.0
        %596 = vmatprep.subr.mxu0 0.0
        %597 = vmatpush1.msra.mxu0 0.0
        %598 = vmatprep.subr.mxu0 0.0
        %599 = vmatpush1.msra.mxu0 0.0
        %600 = vmatprep.subr.mxu0 0.0
        %601 = vmatpush1.msra.mxu0 0.0
        %602 = vmatprep.subr.mxu0 0.0
        %603 = vmatpush1.msra.mxu0 0.0
        %604 = vmatprep.subr.mxu0 0.0
        %605 = vmatpush1.msra.mxu0 0.0
        %606 = vmatprep.subr.mxu0 0.0
        %607 = vmatpush1.msra.mxu0 0.0
        %608 = vmatprep.mubr.f32.mxu0 0.0
        %609 = vmatmul.mubr.f32.gmra.mrb[0].mxu0 %v542
        %v610 = vpop.f32.mrb[0].mxu0
        %v611 = vadd.f32 %v539, %v610
        %v612 = vpop.f32.mrb[0].mxu0
        %613 = vdwg.mxu0
        %v614 = vld [vmem:[%s5] sm:$0xff]
        %v615 = vld [vmem:[%s5 + $0x8] sm:$0xff]
        %v616 = vld [vmem:[%s5 + $0x10] sm:$0xff]
        %v617 = vld [vmem:[%s5 + $0x18] sm:$0xff]
        %v618 = vld [vmem:[%s6] sm:$0x3]
        %v619 = vlaneseq
        %v620 = vshrl.u32 %v619, 7
        %v621 = vsub.s32 0, %v620
        %v622 = vrot.slane %v618, %v621
        %v623 = vadd.f32 %v611, %v622
        %v624 = vlaneseq
        %v625 = vshrl.u32 %v624, 7
        %v626 = vsub.s32 1, %v625
        %v627 = vrot.slane %v618, %v626
        %v629 = vsel %vm540, %v534, 0
        %631 = vmatprep.subr.mxu0 0.0
        %632 = vmatpush1.msra.mxu0 %v614
        %633 = vmatprep.subr.mxu0 0.0
        %634 = vmatpush1.msra.mxu0 %v615
        %635 = vmatprep.subr.mxu0 0.0
        %636 = vmatpush1.msra.mxu0 %v616
        %637 = vmatprep.subr.mxu0 0.0
        %638 = vmatpush1.msra.mxu0 %v617
        %639 = vmatprep.subr.mxu0 0.0
        %640 = vmatpush1.msra.mxu0 0.0
        %641 = vmatprep.subr.mxu0 0.0
        %642 = vmatpush1.msra.mxu0 0.0
        %643 = vmatprep.subr.mxu0 0.0
        %644 = vmatpush1.msra.mxu0 0.0
        %645 = vmatprep.subr.mxu0 0.0
        %646 = vmatpush1.msra.mxu0 0.0
        %647 = vmatprep.subr.mxu0 0.0
        %648 = vmatpush1.msra.mxu0 0.0
        %649 = vmatprep.subr.mxu0 0.0
        %650 = vmatpush1.msra.mxu0 0.0
        %651 = vmatprep.subr.mxu0 0.0
        %652 = vmatpush1.msra.mxu0 0.0
        %653 = vmatprep.subr.mxu0 0.0
        %654 = vmatpush1.msra.mxu0 0.0
        %655 = vmatprep.subr.mxu0 0.0
        %656 = vmatpush1.msra.mxu0 0.0
        %657 = vmatprep.subr.mxu0 0.0
        %658 = vmatpush1.msra.mxu0 0.0
        %659 = vmatprep.subr.mxu0 0.0
        %660 = vmatpush1.msra.mxu0 0.0
        %661 = vmatprep.subr.mxu0 0.0
        %662 = vmatpush1.msra.mxu0 0.0
        %663 = vmatprep.subr.mxu0 0.0
        %664 = vmatpush1.msra.mxu0 0.0
        %665 = vmatprep.subr.mxu0 0.0
        %666 = vmatpush1.msra.mxu0 0.0
        %667 = vmatprep.subr.mxu0 0.0
        %668 = vmatpush1.msra.mxu0 0.0
        %669 = vmatprep.subr.mxu0 0.0
        %670 = vmatpush1.msra.mxu0 0.0
        %671 = vmatprep.subr.mxu0 0.0
        %672 = vmatpush1.msra.mxu0 0.0
        %673 = vmatprep.subr.mxu0 0.0
        %674 = vmatpush1.msra.mxu0 0.0
        %675 = vmatprep.subr.mxu0 0.0
        %676 = vmatpush1.msra.mxu0 0.0
        %677 = vmatprep.subr.mxu0 0.0
        %678 = vmatpush1.msra.mxu0 0.0
        %679 = vmatprep.subr.mxu0 0.0
        %680 = vmatpush1.msra.mxu0 0.0
        %681 = vmatprep.subr.mxu0 0.0
        %682 = vmatpush1.msra.mxu0 0.0
        %683 = vmatprep.subr.mxu0 0.0
        %684 = vmatpush1.msra.mxu0 0.0
        %685 = vmatprep.subr.mxu0 0.0
        %686 = vmatpush1.msra.mxu0 0.0
        %687 = vmatprep.subr.mxu0 0.0
        %688 = vmatpush1.msra.mxu0 0.0
        %689 = vmatprep.subr.mxu0 0.0
        %690 = vmatpush1.msra.mxu0 0.0
        %691 = vmatprep.subr.mxu0 0.0
        %692 = vmatpush1.msra.mxu0 0.0
        %693 = vmatprep.subr.mxu0 0.0
        %694 = vmatpush1.msra.mxu0 0.0
        %695 = vmatprep.mubr.f32.mxu0 0.0
        %696 = vmatmul.mubr.f32.gmra.mrb[0].mxu0 %v629
        %v697 = vpop.f32.mrb[0].mxu0
        %v698 = vadd.f32 %v627, %v697
        %v699 = vpop.f32.mrb[0].mxu0
        %700 = vdwg.mxu0
        %v701 = vadd.f32 %v623, %v698
        %v702 = vxor.u32 %v701, 2147483648
        %v703 = vmul.f32 %v702, 1.442695
        %v704 = vpow.pop %v703
        %v705 = vadd.f32 %v704, 1.0
        %v706 = vrcp.pop %v705
        %v707 = vmul.f32 1.0, %v706
        %709 = vrot.lane.b32.xlu0 %v698, 64
        %v710 = vpop.permute.xlu0 %709
        %v712 = vmul.f32 %v707, %v710
        %714 = vrot.lane.b32.xlu0 %v712, 64
        %v715 = vpop.permute.xlu0 %714
        %v717 = vadd.f32 %v623, %v715
        %v718 = vtanh.pop %v717
        %v719 = vsub.f32 1.0, %v707
        %721 = vrot.lane.b32.xlu0 %v718, 96
        %v722 = vpop.permute.xlu0 %721
        %v724 = vmul.f32 %v719, %v722
        %725 = vrot.lane.b32.xlu0 %v534, 32
        %v726 = vpop.permute.xlu0 %725
        %v728 = vmul.f32 %v707, %v726
        %v729 = vadd.f32 %v724, %v728
        %731 = vrot.lane.b32.xlu0 %v729, 96
        %v732 = vpop.permute.xlu0 %731
        %vm734 = vcmask 254976
        %735 = vst.msk [vmem:[#allocation2] sm:$0x3] %vm734, %v732
        %v736 = vld [vmem:[%s7] sm:$0xff]
        %v737 = vld [vmem:[%s7 + $0x8] sm:$0xff]
        %v738 = vld [vmem:[%s7 + $0x10] sm:$0xff]
        %v739 = vld [vmem:[%s7 + $0x18] sm:$0xff]
        %v740 = vld [vmem:[%s8] sm:$0x1]
        %v742 = vlaneseq
        %v743 = vshrl.u32 %v742, 7
        %v744 = vsub.s32 0, %v743
        %v745 = vrot.slane %v740, %v744
        %v747 = vsel %vm540, %v732, 0
        %749 = vmatprep.subr.mxu0 0.0
        %750 = vmatpush1.msra.mxu0 %v736
        %751 = vmatprep.subr.mxu0 0.0
        %752 = vmatpush1.msra.mxu0 %v737
        %753 = vmatprep.subr.mxu0 0.0
        %754 = vmatpush1.msra.mxu0 %v738
        %755 = vmatprep.subr.mxu0 0.0
        %756 = vmatpush1.msra.mxu0 %v739
        %757 = vmatprep.subr.mxu0 0.0
        %758 = vmatpush1.msra.mxu0 0.0
        %759 = vmatprep.subr.mxu0 0.0
        %760 = vmatpush1.msra.mxu0 0.0
        %761 = vmatprep.subr.mxu0 0.0
        %762 = vmatpush1.msra.mxu0 0.0
        %763 = vmatprep.subr.mxu0 0.0
        %764 = vmatpush1.msra.mxu0 0.0
        %765 = vmatprep.subr.mxu0 0.0
        %766 = vmatpush1.msra.mxu0 0.0
        %767 = vmatprep.subr.mxu0 0.0
        %768 = vmatpush1.msra.mxu0 0.0
        %769 = vmatprep.subr.mxu0 0.0
        %770 = vmatpush1.msra.mxu0 0.0
        %771 = vmatprep.subr.mxu0 0.0
        %772 = vmatpush1.msra.mxu0 0.0
        %773 = vmatprep.subr.mxu0 0.0
        %774 = vmatpush1.msra.mxu0 0.0
        %775 = vmatprep.subr.mxu0 0.0
        %776 = vmatpush1.msra.mxu0 0.0
        %777 = vmatprep.subr.mxu0 0.0
        %778 = vmatpush1.msra.mxu0 0.0
        %779 = vmatprep.subr.mxu0 0.0
        %780 = vmatpush1.msra.mxu0 0.0
        %781 = vmatprep.subr.mxu0 0.0
        %782 = vmatpush1.msra.mxu0 0.0
        %783 = vmatprep.subr.mxu0 0.0
        %784 = vmatpush1.msra.mxu0 0.0
        %785 = vmatprep.subr.mxu0 0.0
        %786 = vmatpush1.msra.mxu0 0.0
        %787 = vmatprep.subr.mxu0 0.0
        %788 = vmatpush1.msra.mxu0 0.0
        %789 = vmatprep.subr.mxu0 0.0
        %790 = vmatpush1.msra.mxu0 0.0
        %791 = vmatprep.subr.mxu0 0.0
        %792 = vmatpush1.msra.mxu0 0.0
        %793 = vmatprep.subr.mxu0 0.0
        %794 = vmatpush1.msra.mxu0 0.0
        %795 = vmatprep.subr.mxu0 0.0
        %796 = vmatpush1.msra.mxu0 0.0
        %797 = vmatprep.subr.mxu0 0.0
        %798 = vmatpush1.msra.mxu0 0.0
        %799 = vmatprep.subr.mxu0 0.0
        %800 = vmatpush1.msra.mxu0 0.0
        %801 = vmatprep.subr.mxu0 0.0
        %802 = vmatpush1.msra.mxu0 0.0
        %803 = vmatprep.subr.mxu0 0.0
        %804 = vmatpush1.msra.mxu0 0.0
        %805 = vmatprep.subr.mxu0 0.0
        %806 = vmatpush1.msra.mxu0 0.0
        %807 = vmatprep.subr.mxu0 0.0
        %808 = vmatpush1.msra.mxu0 0.0
        %809 = vmatprep.subr.mxu0 0.0
        %810 = vmatpush1.msra.mxu0 0.0
        %811 = vmatprep.subr.mxu0 0.0
        %812 = vmatpush1.msra.mxu0 0.0
        %813 = vmatprep.mubr.f32.mxu0 0.0
        %814 = vmatmul.mubr.f32.gmra.mrb[0].mxu0 %v747
        %v815 = vpop.f32.mrb[0].mxu0
        %v816 = vadd.f32 %v745, %v815
        %v817 = vpop.f32.mrb[0].mxu0
        %818 = vdwg.mxu0
        %819 = vst [vmem:[%s340] sm:$0x3] %v816
        %v820 = vld [vmem:[%s9] sm:$0x3]
        %vm821 = vcmp.ge.f32.partialorder %v820, 2.0
        %vm822 = vcmp.ge.f32.partialorder %v820, 1.0
        %v823 = vsel %vm822, -1e+30, -2e+30
        %v824 = vsel %vm821, %v816, %v823
        %vm825 = vcmask 1041408
        %v826 = vsel %vm825, %v824, -inf
        %827 = vmax.xlane.f32.xlu0 %v826
        %v828 = vpop.xlane.xlu0 %827
        %v829 = vlaneseq
        %v830 = vand.u32 %v829, 127
        %vm831 = vcmp.eq.f32.partialorder %v824, %v828
        %v832 = vsel %vm831, %v830, 128
        %v833 = vsel %vm825, %v832, 2147483647
        %v834 = vand.u32 %v833, 65535
        %v835 = vshra.s32 %v833, 16
        %v836 = vcvt.s32.f32 %v834
        %v837 = vcvt.s32.f32 %v835
        %838 = vmin.xlane.f32.xlu0 %v837
        %v839 = vpop.xlane.xlu0 %838
        %vm840 = vcmp.eq.f32.partialorder %v837, %v839
        %v841 = vsel %vm840, %v836, inf
        %842 = vmin.xlane.f32.xlu0 %v841
        %v843 = vpop.xlane.xlu0 %842
        %v844 = vcvt.f32.s32 %v843
        %v845 = vcvt.f32.s32 %v839
        %v846 = vshll.u32 %v845, 16
        %v847 = vadd.s32 %v846, %v844
        %vm848 = vcmask 1024
        %849 = vst.msk [vmem:[%s350] sm:$0x3] %vm848, %v847
        %vm850 = vcmp.eq.s32.totalorder %v830, %v847
        %v851 = vsel %vm850, 1, 0
        %v852 = vcvt.s32.f32 %v851
        %853 = vst [vmem:[#allocation3] sm:$0x3] %v852
        %s854 = sand.u32 %s224, 1
        %s855 = scalar_lea.sflag [#allocation8], %s854
        %s856 = sand.u32 %s224, 1
        %s857 = smul.addr %s856, 2
        %s858 = scalar_lea.vmem [#allocation7], %s857
        %p859 = scmp.lt.s32.totalorder %s27, 1
        %s860 = scalar_select %p859, %s27, 1
        %s861 = smul.addr %s860, 2
        %s862 = scalar_lea.vmem %s11, %s861
        // Predicated region
        $region61: #{object_decoder_forward.1} parent=55 // pred_check
          %p863 = pneg %p234
        $region62: #{object_decoder_forward.1} parent=55 // pred_check_branch
          %865 = sbr.rel (%p863) target = $region64
        $region63: #{object_decoder_forward.1} parent=55 // pred_region
          %s867 = ssub.s32 32, 32
          %868 = vsyncadd %s855, %s867
          %s869 = smul.addr %s27, 32
          %s870 = scalar_lea.hbm %s10, %s869
          %s872 = sshll.u32 %s858, 4
          %s873 = int_to_ptr.vmem [resolvable:$true] %s872
          %875 = dma.vmem_to_hbm [thread:$0]  %s873, 32, %s870, %s855
        $region64: #{object_decoder_forward.1} parent=55 // pred_fallthru
          _
        // Predicated region
        $region65: #{object_decoder_forward.1} parent=55 // pred_check
          %p876 = pneg %p260
        $region66: #{object_decoder_forward.1} parent=55 // pred_check_branch
          %878 = sbr.rel (%p876) target = $region68
        $region67: #{object_decoder_forward.1} parent=55 // pred_region
          _
        $region68: #{object_decoder_forward.1} parent=55 // pred_fallthru
          _
      $region56: #{object_decoder_forward.1} parent=5 // pred_fallthru
        _
      %p879 = scmp.le.s32.totalorder 2, %s22
      // Predicated region
      $region69: #{object_decoder_forward.1} parent=5 // pred_check
        %p880 = pneg %p879
      $region70: #{object_decoder_forward.1} parent=5 // pred_check_branch
        %882 = sbr.rel (%p880) target = $region72
      $region71: #{object_decoder_forward.1} parent=5 // pred_region
        %s883 = ssub.s32 %s22, 2
        // Predicated region
        $region73: #{object_decoder_forward.1} parent=71 // pred_check
          %p884 = pneg %p240
        $region74: #{object_decoder_forward.1} parent=71 // pred_check_branch
          %886 = sbr.rel (%p884) target = $region76
        $region75: #{object_decoder_forward.1} parent=71 // pred_region
          %s887 = sand.u32 %s225, 1
          %s888 = scalar_lea.sflag [#allocation8], %s887
          %s889 = sand.u32 %s225, 1
          %s890 = smul.addr %s889, 2
          %s891 = scalar_lea.vmem [#allocation7], %s890
          %892 = dma.done %s888, 32
        $region76: #{object_decoder_forward.1} parent=71 // pred_fallthru
          _
        // Predicated region
        $region77: #{object_decoder_forward.1} parent=71 // pred_check
          %p893 = pneg %p266
        $region78: #{object_decoder_forward.1} parent=71 // pred_check_branch
          %895 = sbr.rel (%p893) target = $region80
        $region79: #{object_decoder_forward.1} parent=71 // pred_region
          %p896 = scmp.lt.s32.totalorder %s28, 1
          %s897 = scalar_select %p896, %s28, 1
          %s898 = smul.addr %s897, 2
          %s899 = scalar_lea.vmem %s11, %s898
        $region80: #{object_decoder_forward.1} parent=71 // pred_fallthru
          _
      $region72: #{object_decoder_forward.1} parent=5 // pred_fallthru
        _
    $region6: #{object_decoder_forward.1} parent=1 // loop_footer
      %s26 = sadd.s32 1, %s22
    $region7: #{object_decoder_forward.1} parent=1 // loop_footer_branch
      %21 = sbr.rel target = $region3
    $region8: #{object_decoder_forward.1} parent=1 // loop_exit
      _
    %900 = vsyncpa [#allocation8], 1
    %s901 = scalar_lea.sflag [#allocation8], 1
    %902 = vsyncpa %s901, 1

</llo_original>
